<compile_context>
chip_gen: v7x
topology: tpu7x:2x2x1
jax: 0.10.0
libtpu: 0.0.40
codegen_flags: <defaults>
</compile_context>

<pallas_src>
import jax
import jax.numpy as jnp
from jax.experimental import pallas as pl
from jax.experimental.pallas import tpu as pltpu


def _round_up(x, m):
    return ((x + m - 1) // m) * m


def _cdiv(a, b):
    return -(-a // b)


def _pad2d(a, rows, cols, dtype=None):
    """Zero-pad a 2-D array to (rows, cols); skip copies when already there."""
    dtype = a.dtype if dtype is None else jnp.dtype(dtype)
    if a.shape == (rows, cols):
        return a if a.dtype == dtype else a.astype(dtype)
    out = jnp.zeros((rows, cols), dtype)
    return out.at[: a.shape[0], : a.shape[1]].set(a.astype(dtype))


def _clip_adapter_kernel(alpha_ref, x_ref, proj_ref, w1_ref, w2_ref, o_ref):
    alpha = alpha_ref[0]  # SMEM scalar (no recompile per alpha value)

    # image_features = x @ vit_proj   (f32 operands, f32 accumulation on MXU)
    img = jnp.dot(x_ref[...], proj_ref[...], preferred_element_type=jnp.float32)

    # Adapter MLP: Linear -> ReLU -> Linear -> ReLU (bf16 operands, f32 acc).
    h = jnp.dot(img.astype(jnp.bfloat16), w1_ref[...],
                preferred_element_type=jnp.float32)
    h = jnp.maximum(h, 0.0)
    y = jnp.dot(h.astype(jnp.bfloat16), w2_ref[...],
                preferred_element_type=jnp.float32)
    y = jnp.maximum(y, 0.0)

    # Residual blend (VPU, f32), narrowed to the bf16 output.
    o_ref[...] = (alpha * img + (1.0 - alpha) * y).astype(o_ref.dtype)


def clip_adapter_vit(x_before_proj, vit_proj, w1, w2, alpha, *, max_block_m=1024):
    """Pallas implementation of CLIPADAPTERViT.forward.

    x_before_proj : [B, W]    vit_proj : [W, D]
    w1 : [D, D//r]  (in, out layout => y = x @ w1)    w2 : [D//r, D]
    """
    B, W = x_before_proj.shape
    W2, D = vit_proj.shape
    H = w1.shape[1]
    assert W2 == W and w1.shape[0] == D and w2.shape == (H, D)

    # --- lane-dense padding targets (features -> mult of 128, batch -> 8) ---
    Wp = _round_up(W, 128)
    Dp = _round_up(D, 128)
    Hp = _round_up(H, 128)
    Bp0 = _round_up(B, 8)

    x_itemsize = x_before_proj.dtype.itemsize
    proj_itemsize = vit_proj.dtype.itemsize

    # --- generation-aware VMEM budget ---------------------------------------
    try:
        vmem_cap = int(pltpu.get_tpu_info().vmem_capacity_bytes)
    except Exception:
        vmem_cap = 64 * 1024 * 1024            # smallest current part (v7x)
    vmem_limit = min((vmem_cap * 3) // 4, 96 * 1024 * 1024)

    # Resident weights are single-buffered (pl.Buffered(1)).
    w_bytes = Wp * Dp * proj_itemsize + (Dp * Hp + Hp * Dp) * 2
    # Per-batch-row VMEM: double-buffered x/out streams + kernel-live
    # intermediates (img f32 + bf16 copy, h f32 + bf16 copy, y f32, blend tmp).
    per_row = (2 * Wp * x_itemsize             # x stream (2 buffers)
               + 2 * Dp * 2                    # bf16 out stream (2 buffers)
               + Dp * 14 + Hp * 6)             # live intermediates
    budget = vmem_limit - w_bytes - (2 << 20)  # compiler-scratch headroom

    if budget > 0:
        bm = (budget // per_row) // 8 * 8
        bm = max(bm, min(256, Bp0))            # keep the MXU fed when B allows
    else:
        # TODO(synk): weights alone exceed the VMEM budget; would need K/N
        # tiling of the weight matmuls instead of fully-resident weights.
        bm = 8
    bm = max(8, min(bm, max_block_m, Bp0))

    # --- grid sizing: >=2 even steps (v7x 2 TensorCores), minimal padding ----
    grid_n = _cdiv(Bp0, bm)
    if Bp0 >= 16:
        if grid_n == 1:
            grid_n = 2
        elif grid_n % 2 == 1:
            grid_n += 1
    bm = _round_up(_cdiv(Bp0, grid_n), 8)      # shrink bm -> padding <= 7 rows
    Bp = grid_n * bm

    # --- padding / casting (no-ops when shapes are already aligned) ----------
    # NOTE: under jit with constant weights these fold away; for repeated eager
    # calls, hoist the weight cast/pad out of the per-call path.
    x_p = _pad2d(x_before_proj, Bp, Wp)
    proj_p = _pad2d(vit_proj, Wp, Dp)
    w1_p = _pad2d(w1, Dp, Hp, jnp.bfloat16)
    w2_p = _pad2d(w2, Hp, Dp, jnp.bfloat16)
    alpha_arr = jnp.asarray([alpha], dtype=jnp.float32)

    flops = 2 * B * (W * D + D * H + H * D)
    bytes_accessed = (sum(int(a.size) * a.dtype.itemsize
                          for a in (x_p, proj_p, w1_p, w2_p))
                      + Bp * Dp * 2)

    resident = pl.Buffered(1)  # constant block index -> single VMEM buffer

    out_p = pl.pallas_call(
        _clip_adapter_kernel,
        out_shape=jax.ShapeDtypeStruct((Bp, Dp), jnp.bfloat16),
        grid=(grid_n,),
        in_specs=[
            pl.BlockSpec(memory_space=pltpu.MemorySpace.SMEM),       # alpha
            pl.BlockSpec((bm, Wp), lambda i: (i, 0)),                # x: streamed
            pl.BlockSpec((Wp, Dp), lambda i: (0, 0),                 # vit_proj
                         pipeline_mode=resident),
            pl.BlockSpec((Dp, Hp), lambda i: (0, 0),                 # w1
                         pipeline_mode=resident),
            pl.BlockSpec((Hp, Dp), lambda i: (0, 0),                 # w2
                         pipeline_mode=resident),
        ],
        out_specs=pl.BlockSpec((bm, Dp), lambda i: (i, 0)),
        compiler_params=pltpu.CompilerParams(
            dimension_semantics=("parallel",),
            vmem_limit_bytes=int(vmem_limit),
        ),
        cost_estimate=pl.CostEstimate(
            flops=flops, transcendentals=0, bytes_accessed=int(bytes_accessed)),
    )(alpha_arr, x_p, proj_p, w1_p, w2_p)

    return out_p[:B, :D]


def clip_adapter_ref(x_before_proj, vit_proj, w1, w2, alpha):
    """Plain-JAX reference (mirrors the PyTorch forward, f32 math)."""
    img = x_before_proj @ vit_proj
    h = jnp.maximum(img @ w1, 0.0)
    y = jnp.maximum(h @ w2, 0.0)
    return alpha * img + (1.0 - alpha) * y


if __name__ == "__main__":
    # Small shapes consistent with the module:
    #   width W = 32, output_dim D = 64, reduction r = 4 -> hidden = 16, B = 8
    B, W, D, reduction = 8, 32, 64, 4
    H = D // reduction
    alpha = 0.2

    key = jax.random.PRNGKey(0)
    k_x, k_proj, k_w1, k_w2 = jax.random.split(key, 4)

    x_before_proj = jax.random.normal(k_x, (B, W), dtype=jnp.float32)
    vit_proj = jax.random.normal(k_proj, (W, D), dtype=jnp.float32) * 0.05
    # nn.Linear stores weights as (out, in); we keep them as (in, out) so the
    # kernel does x @ w, equivalent to x @ weight.T in torch.
    w1 = jax.random.normal(k_w1, (D, H), dtype=jnp.float32) * 0.05
    w2 = jax.random.normal(k_w2, (H, D), dtype=jnp.float32) * 0.05

    out = clip_adapter_vit(x_before_proj, vit_proj, w1, w2, alpha)
    out = jax.block_until_ready(out)

    ref = clip_adapter_ref(x_before_proj, vit_proj, w1, w2, alpha)
    assert out.shape == (B, D)
    # bf16 adapter operands + bf16 output -> loose tolerance vs f32 reference.
    assert jnp.allclose(out.astype(jnp.float32), ref, atol=3e-2, rtol=3e-2), \
        "mismatch vs reference"

    print("KERNEL_OK")
</pallas_src>

<mosaic_0001>
module attributes {stable_mosaic.version = 11 : i64} {
  func.func @_clip_adapter_kernel(%arg0: i32, %arg1: memref<1xf32, #tpu.memory_space<smem>>, %arg2: memref<8x128xf32, #tpu.memory_space<vmem>>, %arg3: memref<128x128xf32, #tpu.memory_space<vmem>>, %arg4: memref<128x128xbf16, #tpu.memory_space<vmem>>, %arg5: memref<128x128xbf16, #tpu.memory_space<vmem>>, %arg6: memref<8x128xbf16, #tpu.memory_space<vmem>>) attributes {dimension_semantics = [#tpu.dimension_semantics<parallel>], iteration_bounds = array<i64: 1>, scalar_prefetch = 0 : i64, scratch_operands = 0 : i64, tpu.core_type = #tpu.core_type<tc>, window_params = [{transform_indices = @transform_0, window_bounds = array<i64: 1>}, {transform_indices = @transform_1, window_bounds = array<i64: 8, 128>}, {pipeline_mode = #tpu.pipeline_mode<synchronous>, transform_indices = @transform_2, window_bounds = array<i64: 128, 128>}, {pipeline_mode = #tpu.pipeline_mode<synchronous>, transform_indices = @transform_3, window_bounds = array<i64: 128, 128>}, {pipeline_mode = #tpu.pipeline_mode<synchronous>, transform_indices = @transform_4, window_bounds = array<i64: 128, 128>}, {transform_indices = @transform_5, window_bounds = array<i64: 8, 128>}]} {
    %c0 = arith.constant 0 : index
    %0 = memref.load %arg1[%c0] : memref<1xf32, #tpu.memory_space<smem>>
    %c0_0 = arith.constant 0 : index
    %c0_1 = arith.constant 0 : index
    %1 = vector.load %arg2[%c0_0, %c0_1] : memref<8x128xf32, #tpu.memory_space<vmem>>, vector<8x128xf32>
    %c0_2 = arith.constant 0 : index
    %c0_3 = arith.constant 0 : index
    %2 = vector.load %arg3[%c0_2, %c0_3] : memref<128x128xf32, #tpu.memory_space<vmem>>, vector<128x128xf32>
    %cst = arith.constant dense<0.000000e+00> : vector<8x128xf32>
    %3 = tpu.matmul %1, %2, %cst {dimension_numbers = #tpu.dot_dimension_numbers<[1], [0], [0], [1], [0, 0, 1, 1], [], []>} : vector<8x128xf32>, vector<128x128xf32>, vector<8x128xf32> -> vector<8x128xf32>
    %4 = arith.truncf %3 : vector<8x128xf32> to vector<8x128xbf16>
    %c0_4 = arith.constant 0 : index
    %c0_5 = arith.constant 0 : index
    %5 = vector.load %arg4[%c0_4, %c0_5] : memref<128x128xbf16, #tpu.memory_space<vmem>>, vector<128x128xbf16>
    %cst_6 = arith.constant dense<0.000000e+00> : vector<8x128xf32>
    %6 = tpu.matmul %4, %5, %cst_6 {dimension_numbers = #tpu.dot_dimension_numbers<[1], [0], [0], [1], [0, 0, 1, 1], [], []>} : vector<8x128xbf16>, vector<128x128xbf16>, vector<8x128xf32> -> vector<8x128xf32>
    %cst_7 = arith.constant 0.000000e+00 : f32
    %7 = vector.broadcast %cst_7 : f32 to vector<8x128xf32>
    %8 = arith.maximumf %6, %7 : vector<8x128xf32>
    %9 = arith.truncf %8 : vector<8x128xf32> to vector<8x128xbf16>
    %c0_8 = arith.constant 0 : index
    %c0_9 = arith.constant 0 : index
    %10 = vector.load %arg5[%c0_8, %c0_9] : memref<128x128xbf16, #tpu.memory_space<vmem>>, vector<128x128xbf16>
    %cst_10 = arith.constant dense<0.000000e+00> : vector<8x128xf32>
    %11 = tpu.matmul %9, %10, %cst_10 {dimension_numbers = #tpu.dot_dimension_numbers<[1], [0], [0], [1], [0, 0, 1, 1], [], []>} : vector<8x128xbf16>, vector<128x128xbf16>, vector<8x128xf32> -> vector<8x128xf32>
    %cst_11 = arith.constant 0.000000e+00 : f32
    %12 = vector.broadcast %cst_11 : f32 to vector<8x128xf32>
    %13 = arith.maximumf %11, %12 : vector<8x128xf32>
    %14 = vector.broadcast %0 : f32 to vector<8x128xf32>
    %15 = arith.mulf %14, %3 : vector<8x128xf32>
    %cst_12 = arith.constant 1.000000e+00 : f32
    %16 = arith.subf %cst_12, %0 : f32
    %17 = vector.broadcast %16 : f32 to vector<8x128xf32>
    %18 = arith.mulf %17, %13 : vector<8x128xf32>
    %19 = arith.addf %15, %18 : vector<8x128xf32>
    %20 = arith.truncf %19 : vector<8x128xf32> to vector<8x128xbf16>
    %c0_13 = arith.constant 0 : index
    %c0_14 = arith.constant 0 : index
    %21 = vector.load %arg6[%c0_13, %c0_14] : memref<8x128xbf16, #tpu.memory_space<vmem>>, vector<8x128xbf16>
    tpu.vector_store %arg6[%c0_13, %c0_14], %20 {strides = array<i32>} : memref<8x128xbf16, #tpu.memory_space<vmem>>, vector<8x128xbf16>,
    return
  }
  func.func @transform_0(%arg0: i32) -> i32 {
    %c0_i32 = arith.constant 0 : i32
    %c0_i32_0 = arith.constant 0 : i32
    return %c0_i32 : i32
  }
  func.func @transform_1(%arg0: i32) -> (i32, i32) {
    %c0_i32 = arith.constant 0 : i32
    %c0_i32_0 = arith.constant 0 : i32
    return %arg0, %c0_i32 : i32, i32
  }
  func.func @transform_2(%arg0: i32) -> (i32, i32) {
    %c0_i32 = arith.constant 0 : i32
    %c0_i32_0 = arith.constant 0 : i32
    %c0_i32_1 = arith.constant 0 : i32
    return %c0_i32, %c0_i32_0 : i32, i32
  }
  func.func @transform_3(%arg0: i32) -> (i32, i32) {
    %c0_i32 = arith.constant 0 : i32
    %c0_i32_0 = arith.constant 0 : i32
    %c0_i32_1 = arith.constant 0 : i32
    return %c0_i32, %c0_i32_0 : i32, i32
  }
  func.func @transform_4(%arg0: i32) -> (i32, i32) {
    %c0_i32 = arith.constant 0 : i32
    %c0_i32_0 = arith.constant 0 : i32
    %c0_i32_1 = arith.constant 0 : i32
    return %c0_i32, %c0_i32_0 : i32, i32
  }
  func.func @transform_5(%arg0: i32) -> (i32, i32) {
    %c0_i32 = arith.constant 0 : i32
    %c0_i32_0 = arith.constant 0 : i32
    return %arg0, %c0_i32 : i32, i32
  }
}

</mosaic_0001>

<llo_original>
// kernel: tpu_custom_call.1
$region0: #{tpu_custom_call.1}
  #allocation0 [shape = 'u32[]', space=smem, size = 0x4, offset = 0x4, fixed_abs, tag = 'smem constant byte address 0x4 - core index']
  #allocation1 [shape = 'u32[144,128]{1,0:T(1,128)}', space=vmem, size = 0x12000, scoped, tag = 'internal scratch']
  #allocation2 [shape = 'f32[1]{0:T(128)S(6)}', space=smem, size = 0x200, scoped, tag = 'scoped memory for tpu_custom_call.1']
  %s0 = inlined_call_operand.<no memory space> [shape: f32[1], index: 0, kind: input, shape index: {}]
  %s1 = inlined_call_operand.hbm [shape: f32[8,128], index: 1, kind: input, shape index: {}]
  %s2 = inlined_call_operand.hbm [shape: f32[128,128], index: 2, kind: input, shape index: {}]
  %s3 = inlined_call_operand.hbm [shape: bf16[128,128], index: 3, kind: input, shape index: {}]
  %s4 = inlined_call_operand.hbm [shape: bf16[128,128], index: 4, kind: input, shape index: {}]
  %s5 = inlined_call_operand.hbm [shape: bf16[8,128], index: 5, kind: output, shape index: {}]
  %s6 = sld [smem:[#allocation0]]
  $region46: #{tpu_custom_call.1} parent=0
    _
  %s8 = ssub.s32 1, %s6
  %s9 = scalar_select 0, %s8, %s6
  %10 = sst [smem:[#allocation2]] %s0
  $region1: #{tpu_custom_call.1} parent=0
    #allocation3 [shape = 'u8[4096]{0}', space=vmem, size = 0x1000, scoped, tag = 'input window, operand 1, single buffered']
    #allocation4 [shape = 's32[1]{0}', space=sflag, size = 0x4, scoped, tag = 'scoped memory for tpu_custom_call.1']
    #allocation5 [shape = 's32[1]{0}', space=sflag, size = 0x4, scoped, tag = 'scoped memory for tpu_custom_call.1']
    #allocation6 [shape = 'u8[65536]{0}', space=vmem, size = 0x10000, scoped, tag = 'input window, operand 2, single buffered']
    #allocation7 [shape = 's32[1]{0}', space=sflag, size = 0x4, scoped, tag = 'scoped memory for tpu_custom_call.1']
    #allocation8 [shape = 'u8[32768]{0}', space=vmem, size = 0x8000, scoped, tag = 'input window, operand 3, single buffered']
    #allocation9 [shape = 'u8[32768]{0}', space=vmem, size = 0x8000, scoped, tag = 'input window, operand 4, single buffered']
    #allocation10 [shape = 's32[1]{0}', space=sflag, size = 0x4, scoped, tag = 'scoped memory for tpu_custom_call.1']
    #allocation11 [shape = 'u8[2048]{0}', space=vmem, size = 0x800, scoped, tag = 'output window, operand 0, single buffered']
    %11 = vsyncpa [#allocation4], 0
    %12 = vsyncpa [#allocation7], 0
    %13 = vsyncpa [#allocation10], 0
    %14 = vsyncpa [#allocation5], 0
    // Predicated region
    $region2: #{tpu_custom_call.1} parent=1 // pred_check
      _
    $region3: #{tpu_custom_call.1} parent=1 // pred_check_branch
      %16 = sbr.rel (0) target = $region5
    $region4: #{tpu_custom_call.1} parent=1 // pred_region
      _
    $region5: #{tpu_custom_call.1} parent=1 // pred_fallthru
      _
    // Predicated region
    $region6: #{tpu_custom_call.1} parent=1 // pred_check
      _
    $region7: #{tpu_custom_call.1} parent=1 // pred_check_branch
      %18 = sbr.rel (0) target = $region9
    $region8: #{tpu_custom_call.1} parent=1 // pred_region
      %s20 = ssub.s32 128, 128
      %21 = vsyncadd [#allocation4], %s20
      %s23 = sshll.u32 [#allocation3], 4
      %s24 = int_to_ptr.vmem [resolvable:$true] %s23
      %26 = dma.hbm_to_vmem [thread:$0]  %s1, 128, %s24, [#allocation4]
    $region9: #{tpu_custom_call.1} parent=1 // pred_fallthru
      _
    // Predicated region
    $region10: #{tpu_custom_call.1} parent=1 // pred_check
      _
    $region11: #{tpu_custom_call.1} parent=1 // pred_check_branch
      %28 = sbr.rel (0) target = $region13
    $region12: #{tpu_custom_call.1} parent=1 // pred_region
      %s30 = ssub.s32 2048, 2048
      %31 = vsyncadd [#allocation7], %s30
      %s32 = sshll.u32 [#allocation6], 4
      %s33 = int_to_ptr.vmem [resolvable:$true] %s32
      %38 = dma.hbm_to_vmem [thread:$0]  %s2, 2048, %s33, [#allocation7], 128, 128, 8
    $region13: #{tpu_custom_call.1} parent=1 // pred_fallthru
      _
    // Predicated region
    $region14: #{tpu_custom_call.1} parent=1 // pred_check
      _
    $region15: #{tpu_custom_call.1} parent=1 // pred_check_branch
      %40 = sbr.rel (0) target = $region17
    $region16: #{tpu_custom_call.1} parent=1 // pred_region
      %s42 = ssub.s32 1024, 1024
      %43 = vsyncadd [#allocation7], %s42
      %s44 = sshll.u32 [#allocation8], 4
      %s45 = int_to_ptr.vmem [resolvable:$true] %s44
      %50 = dma.hbm_to_vmem [thread:$0]  %s3, 1024, %s45, [#allocation7], 64, 64, 4
    $region17: #{tpu_custom_call.1} parent=1 // pred_fallthru
      _
    // Predicated region
    $region18: #{tpu_custom_call.1} parent=1 // pred_check
      _
    $region19: #{tpu_custom_call.1} parent=1 // pred_check_branch
      %52 = sbr.rel (0) target = $region21
    $region20: #{tpu_custom_call.1} parent=1 // pred_region
      %s54 = ssub.s32 1024, 1024
      %55 = vsyncadd [#allocation10], %s54
      %s56 = sshll.u32 [#allocation9], 4
      %s57 = int_to_ptr.vmem [resolvable:$true] %s56
      %62 = dma.hbm_to_vmem [thread:$0]  %s4, 1024, %s57, [#allocation10], 64, 64, 4
    $region21: #{tpu_custom_call.1} parent=1 // pred_fallthru
      _
    // Predicated region
    $region22: #{tpu_custom_call.1} parent=1 // pred_check
      _
    $region23: #{tpu_custom_call.1} parent=1 // pred_check_branch
      %64 = sbr.rel (0) target = $region25
    $region24: #{tpu_custom_call.1} parent=1 // pred_region
      %65 = dma.done [#allocation4], 128
    $region25: #{tpu_custom_call.1} parent=1 // pred_fallthru
      _
    // Predicated region
    $region26: #{tpu_custom_call.1} parent=1 // pred_check
      _
    $region27: #{tpu_custom_call.1} parent=1 // pred_check_branch
      %67 = sbr.rel (0) target = $region29
    $region28: #{tpu_custom_call.1} parent=1 // pred_region
      %68 = dma.done [#allocation7], 2048
    $region29: #{tpu_custom_call.1} parent=1 // pred_fallthru
      _
    // Predicated region
    $region30: #{tpu_custom_call.1} parent=1 // pred_check
      _
    $region31: #{tpu_custom_call.1} parent=1 // pred_check_branch
      %70 = sbr.rel (0) target = $region33
    $region32: #{tpu_custom_call.1} parent=1 // pred_region
      %71 = dma.done [#allocation7], 1024
    $region33: #{tpu_custom_call.1} parent=1 // pred_fallthru
      _
    // Predicated region
    $region34: #{tpu_custom_call.1} parent=1 // pred_check
      _
    $region35: #{tpu_custom_call.1} parent=1 // pred_check_branch
      %73 = sbr.rel (0) target = $region37
    $region36: #{tpu_custom_call.1} parent=1 // pred_region
      %74 = dma.done [#allocation10], 1024
    $region37: #{tpu_custom_call.1} parent=1 // pred_fallthru
      _
    %s76 = sld [smem:[#allocation2]]
    %v77 = vld [vmem:[#allocation3] sm:$0xff]
    %v78 = vld [vmem:[#allocation6] sm:$0xff]
    %v79 = vld [vmem:[#allocation6 + $0x8] sm:$0xff]
    %v80 = vld [vmem:[#allocation6 + $0x10] sm:$0xff]
    %v81 = vld [vmem:[#allocation6 + $0x18] sm:$0xff]
    %v82 = vld [vmem:[#allocation6 + $0x20] sm:$0xff]
    %v83 = vld [vmem:[#allocation6 + $0x28] sm:$0xff]
    %v84 = vld [vmem:[#allocation6 + $0x30] sm:$0xff]
    %v85 = vld [vmem:[#allocation6 + $0x38] sm:$0xff]
    %v86 = vld [vmem:[#allocation6 + $0x40] sm:$0xff]
    %v87 = vld [vmem:[#allocation6 + $0x48] sm:$0xff]
    %v88 = vld [vmem:[#allocation6 + $0x50] sm:$0xff]
    %v89 = vld [vmem:[#allocation6 + $0x58] sm:$0xff]
    %v90 = vld [vmem:[#allocation6 + $0x60] sm:$0xff]
    %v91 = vld [vmem:[#allocation6 + $0x68] sm:$0xff]
    %v92 = vld [vmem:[#allocation6 + $0x70] sm:$0xff]
    %v93 = vld [vmem:[#allocation6 + $0x78] sm:$0xff]
    %94 = vmatprep.subr.mxu0 0.0
    %95 = vmatpush1.msra.mxu0 %v78
    %96 = vmatprep.subr.mxu0 0.0
    %97 = vmatpush1.msra.mxu0 %v79
    %98 = vmatprep.subr.mxu0 0.0
    %99 = vmatpush1.msra.mxu0 %v80
    %100 = vmatprep.subr.mxu0 0.0
    %101 = vmatpush1.msra.mxu0 %v81
    %102 = vmatprep.subr.mxu0 0.0
    %103 = vmatpush1.msra.mxu0 %v82
    %104 = vmatprep.subr.mxu0 0.0
    %105 = vmatpush1.msra.mxu0 %v83
    %106 = vmatprep.subr.mxu0 0.0
    %107 = vmatpush1.msra.mxu0 %v84
    %108 = vmatprep.subr.mxu0 0.0
    %109 = vmatpush1.msra.mxu0 %v85
    %110 = vmatprep.subr.mxu0 0.0
    %111 = vmatpush1.msra.mxu0 %v86
    %112 = vmatprep.subr.mxu0 0.0
    %113 = vmatpush1.msra.mxu0 %v87
    %114 = vmatprep.subr.mxu0 0.0
    %115 = vmatpush1.msra.mxu0 %v88
    %116 = vmatprep.subr.mxu0 0.0
    %117 = vmatpush1.msra.mxu0 %v89
    %118 = vmatprep.subr.mxu0 0.0
    %119 = vmatpush1.msra.mxu0 %v90
    %120 = vmatprep.subr.mxu0 0.0
    %121 = vmatpush1.msra.mxu0 %v91
    %122 = vmatprep.subr.mxu0 0.0
    %123 = vmatpush1.msra.mxu0 %v92
    %124 = vmatprep.subr.mxu0 0.0
    %125 = vmatpush1.msra.mxu0 %v93
    %126 = vmatprep.subr.mxu0 0.0
    %127 = vmatpush1.msra.mxu0 0.0
    %128 = vmatprep.subr.mxu0 0.0
    %129 = vmatpush1.msra.mxu0 0.0
    %130 = vmatprep.subr.mxu0 0.0
    %131 = vmatpush1.msra.mxu0 0.0
    %132 = vmatprep.subr.mxu0 0.0
    %133 = vmatpush1.msra.mxu0 0.0
    %134 = vmatprep.subr.mxu0 0.0
    %135 = vmatpush1.msra.mxu0 0.0
    %136 = vmatprep.subr.mxu0 0.0
    %137 = vmatpush1.msra.mxu0 0.0
    %138 = vmatprep.subr.mxu0 0.0
    %139 = vmatpush1.msra.mxu0 0.0
    %140 = vmatprep.subr.mxu0 0.0
    %141 = vmatpush1.msra.mxu0 0.0
    %142 = vmatprep.subr.mxu0 0.0
    %143 = vmatpush1.msra.mxu0 0.0
    %144 = vmatprep.subr.mxu0 0.0
    %145 = vmatpush1.msra.mxu0 0.0
    %146 = vmatprep.subr.mxu0 0.0
    %147 = vmatpush1.msra.mxu0 0.0
    %148 = vmatprep.subr.mxu0 0.0
    %149 = vmatpush1.msra.mxu0 0.0
    %150 = vmatprep.subr.mxu0 0.0
    %151 = vmatpush1.msra.mxu0 0.0
    %152 = vmatprep.subr.mxu0 0.0
    %153 = vmatpush1.msra.mxu0 0.0
    %154 = vmatprep.subr.mxu0 0.0
    %155 = vmatpush1.msra.mxu0 0.0
    %156 = vmatprep.subr.mxu0 0.0
    %157 = vmatpush1.msra.mxu0 0.0
    %158 = vmatprep.mubr.f32.mxu0 0.0
    %159 = vmatmul.mubr.f32.gmra.mrb[0].mxu0 %v77
    %v160 = vpop.f32.mrb[0].mxu0
    %v161 = vadd.f32 0.0, %v160
    %v162 = vpop.f32.mrb[0].mxu0
    %163 = vdwg.mxu0
    %v164 = vpack.c.bf16 %v161, %v161
    %v165 = vld [vmem:[#allocation8] sm:$0xf]
    %v166 = vld [vmem:[#allocation8 + $0x4] sm:$0xf]
    %v167 = vld [vmem:[#allocation8 + $0x8] sm:$0xf]
    %v168 = vld [vmem:[#allocation8 + $0xc] sm:$0xf]
    %v169 = vld [vmem:[#allocation8 + $0x10] sm:$0xf]
    %v170 = vld [vmem:[#allocation8 + $0x14] sm:$0xf]
    %v171 = vld [vmem:[#allocation8 + $0x18] sm:$0xf]
    %v172 = vld [vmem:[#allocation8 + $0x1c] sm:$0xf]
    %v173 = vld [vmem:[#allocation8 + $0x20] sm:$0xf]
    %v174 = vld [vmem:[#allocation8 + $0x24] sm:$0xf]
    %v175 = vld [vmem:[#allocation8 + $0x28] sm:$0xf]
    %v176 = vld [vmem:[#allocation8 + $0x2c] sm:$0xf]
    %v177 = vld [vmem:[#allocation8 + $0x30] sm:$0xf]
    %v178 = vld [vmem:[#allocation8 + $0x34] sm:$0xf]
    %v179 = vld [vmem:[#allocation8 + $0x38] sm:$0xf]
    %v180 = vld [vmem:[#allocation8 + $0x3c] sm:$0xf]
    %v197 = vunpack.c.l.b16 %v165
    %v198 = vunpack.c.l.b16 %v166
    %v199 = vunpack.c.l.b16 %v167
    %v200 = vunpack.c.l.b16 %v168
    %v201 = vunpack.c.l.b16 %v169
    %v202 = vunpack.c.l.b16 %v170
    %v203 = vunpack.c.l.b16 %v171
    %v204 = vunpack.c.l.b16 %v172
    %v205 = vunpack.c.l.b16 %v173
    %v206 = vunpack.c.l.b16 %v174
    %v207 = vunpack.c.l.b16 %v175
    %v208 = vunpack.c.l.b16 %v176
    %v209 = vunpack.c.l.b16 %v177
    %v210 = vunpack.c.l.b16 %v178
    %v211 = vunpack.c.l.b16 %v179
    %v212 = vunpack.c.l.b16 %v180
    %v213 = vpack.c.b16 %v198, %v197
    %v214 = vpack.c.b16 %v200, %v199
    %v215 = vpack.c.b16 %v202, %v201
    %v216 = vpack.c.b16 %v204, %v203
    %v217 = vpack.c.b16 %v206, %v205
    %v218 = vpack.c.b16 %v208, %v207
    %v219 = vpack.c.b16 %v210, %v209
    %v220 = vpack.c.b16 %v212, %v211
    %229 = vmatprep.subr.bf16.mxu0 0
    %230 = vmatpush1.bf16.msra.mxu0 %v213
    %231 = vmatprep.subr.bf16.mxu0 0
    %232 = vmatpush1.bf16.msra.mxu0 %v214
    %233 = vmatprep.subr.bf16.mxu0 0
    %234 = vmatpush1.bf16.msra.mxu0 %v215
    %235 = vmatprep.subr.bf16.mxu0 0
    %236 = vmatpush1.bf16.msra.mxu0 %v216
    %237 = vmatprep.subr.bf16.mxu0 0
    %238 = vmatpush1.bf16.msra.mxu0 %v217
    %239 = vmatprep.subr.bf16.mxu0 0
    %240 = vmatpush1.bf16.msra.mxu0 %v218
    %241 = vmatprep.subr.bf16.mxu0 0
    %242 = vmatpush1.bf16.msra.mxu0 %v219
    %243 = vmatprep.subr.bf16.mxu0 0
    %244 = vmatpush1.bf16.msra.mxu0 %v220
    %245 = vmatprep.subr.bf16.mxu0 0
    %246 = vmatpush1.bf16.msra.mxu0 0
    %247 = vmatprep.subr.bf16.mxu0 0
    %248 = vmatpush1.bf16.msra.mxu0 0
    %249 = vmatprep.subr.bf16.mxu0 0
    %250 = vmatpush1.bf16.msra.mxu0 0
    %251 = vmatprep.subr.bf16.mxu0 0
    %252 = vmatpush1.bf16.msra.mxu0 0
    %253 = vmatprep.subr.bf16.mxu0 0
    %254 = vmatpush1.bf16.msra.mxu0 0
    %255 = vmatprep.subr.bf16.mxu0 0
    %256 = vmatpush1.bf16.msra.mxu0 0
    %257 = vmatprep.subr.bf16.mxu0 0
    %258 = vmatpush1.bf16.msra.mxu0 0
    %259 = vmatprep.subr.bf16.mxu0 0
    %260 = vmatpush1.bf16.msra.mxu0 0
    %261 = vmatprep.mubr.bf16.mxu0 0
    %262 = vmatmul.mubr.bf16.gmra.mrb[0].mxu0 %v164
    %v263 = vpop.f32.mrb[0].mxu0
    %v264 = vadd.f32 0.0, %v263
    %v265 = vpop.f32.mrb[0].mxu0
    %v266 = vpop.f32.mrb[0].mxu0
    %v267 = vpop.f32.mrb[0].mxu0
    %268 = vdwg.mxu0
    %v269 = vmax.f32 %v264, 0.0
    %v270 = vpack.c.bf16 %v269, %v269
    %v271 = vld [vmem:[#allocation9] sm:$0xf]
    %v272 = vld [vmem:[#allocation9 + $0x4] sm:$0xf]
    %v273 = vld [vmem:[#allocation9 + $0x8] sm:$0xf]
    %v274 = vld [vmem:[#allocation9 + $0xc] sm:$0xf]
    %v275 = vld [vmem:[#allocation9 + $0x10] sm:$0xf]
    %v276 = vld [vmem:[#allocation9 + $0x14] sm:$0xf]
    %v277 = vld [vmem:[#allocation9 + $0x18] sm:$0xf]
    %v278 = vld [vmem:[#allocation9 + $0x1c] sm:$0xf]
    %v279 = vld [vmem:[#allocation9 + $0x20] sm:$0xf]
    %v280 = vld [vmem:[#allocation9 + $0x24] sm:$0xf]
    %v281 = vld [vmem:[#allocation9 + $0x28] sm:$0xf]
    %v282 = vld [vmem:[#allocation9 + $0x2c] sm:$0xf]
    %v283 = vld [vmem:[#allocation9 + $0x30] sm:$0xf]
    %v284 = vld [vmem:[#allocation9 + $0x34] sm:$0xf]
    %v285 = vld [vmem:[#allocation9 + $0x38] sm:$0xf]
    %v286 = vld [vmem:[#allocation9 + $0x3c] sm:$0xf]
    %v303 = vunpack.c.l.b16 %v271
    %v304 = vunpack.c.l.b16 %v272
    %v305 = vunpack.c.l.b16 %v273
    %v306 = vunpack.c.l.b16 %v274
    %v307 = vunpack.c.l.b16 %v275
    %v308 = vunpack.c.l.b16 %v276
    %v309 = vunpack.c.l.b16 %v277
    %v310 = vunpack.c.l.b16 %v278
    %v311 = vunpack.c.l.b16 %v279
    %v312 = vunpack.c.l.b16 %v280
    %v313 = vunpack.c.l.b16 %v281
    %v314 = vunpack.c.l.b16 %v282
    %v315 = vunpack.c.l.b16 %v283
    %v316 = vunpack.c.l.b16 %v284
    %v317 = vunpack.c.l.b16 %v285
    %v318 = vunpack.c.l.b16 %v286
    %v319 = vpack.c.b16 %v304, %v303
    %v320 = vpack.c.b16 %v306, %v305
    %v321 = vpack.c.b16 %v308, %v307
    %v322 = vpack.c.b16 %v310, %v309
    %v323 = vpack.c.b16 %v312, %v311
    %v324 = vpack.c.b16 %v314, %v313
    %v325 = vpack.c.b16 %v316, %v315
    %v326 = vpack.c.b16 %v318, %v317
    %335 = vmatprep.subr.bf16.mxu0 0
    %336 = vmatpush1.bf16.msra.mxu0 %v319
    %337 = vmatprep.subr.bf16.mxu0 0
    %338 = vmatpush1.bf16.msra.mxu0 %v320
    %339 = vmatprep.subr.bf16.mxu0 0
    %340 = vmatpush1.bf16.msra.mxu0 %v321
    %341 = vmatprep.subr.bf16.mxu0 0
    %342 = vmatpush1.bf16.msra.mxu0 %v322
    %343 = vmatprep.subr.bf16.mxu0 0
    %344 = vmatpush1.bf16.msra.mxu0 %v323
    %345 = vmatprep.subr.bf16.mxu0 0
    %346 = vmatpush1.bf16.msra.mxu0 %v324
    %347 = vmatprep.subr.bf16.mxu0 0
    %348 = vmatpush1.bf16.msra.mxu0 %v325
    %349 = vmatprep.subr.bf16.mxu0 0
    %350 = vmatpush1.bf16.msra.mxu0 %v326
    %351 = vmatprep.subr.bf16.mxu0 0
    %352 = vmatpush1.bf16.msra.mxu0 0
    %353 = vmatprep.subr.bf16.mxu0 0
    %354 = vmatpush1.bf16.msra.mxu0 0
    %355 = vmatprep.subr.bf16.mxu0 0
    %356 = vmatpush1.bf16.msra.mxu0 0
    %357 = vmatprep.subr.bf16.mxu0 0
    %358 = vmatpush1.bf16.msra.mxu0 0
    %359 = vmatprep.subr.bf16.mxu0 0
    %360 = vmatpush1.bf16.msra.mxu0 0
    %361 = vmatprep.subr.bf16.mxu0 0
    %362 = vmatpush1.bf16.msra.mxu0 0
    %363 = vmatprep.subr.bf16.mxu0 0
    %364 = vmatpush1.bf16.msra.mxu0 0
    %365 = vmatprep.subr.bf16.mxu0 0
    %366 = vmatpush1.bf16.msra.mxu0 0
    %367 = vmatprep.mubr.bf16.mxu0 0
    %368 = vmatmul.mubr.bf16.gmra.mrb[0].mxu0 %v270
    %v369 = vpop.f32.mrb[0].mxu0
    %v370 = vadd.f32 0.0, %v369
    %v371 = vpop.f32.mrb[0].mxu0
    %v372 = vpop.f32.mrb[0].mxu0
    %v373 = vpop.f32.mrb[0].mxu0
    %374 = vdwg.mxu0
    %v375 = vmax.f32 %v370, 0.0
    %v376 = vstv %s76
    %v377 = vmul.f32 %v376, %v161
    %s378 = ssub.f32 1.0, %s76
    %v379 = vstv %s378
    %v380 = vmul.f32 %v379, %v375
    %v381 = vadd.f32 %v377, %v380
    %v382 = vpack.c.bf16 %v381, %v381
    %383 = vst [vmem:[#allocation11] sm:$0xf] %v382
    // Predicated region
    $region38: #{tpu_custom_call.1} parent=1 // pred_check
      _
    $region39: #{tpu_custom_call.1} parent=1 // pred_check_branch
      %385 = sbr.rel (0) target = $region41
    $region40: #{tpu_custom_call.1} parent=1 // pred_region
      %s387 = ssub.s32 64, 64
      %388 = vsyncadd [#allocation5], %s387
      %s390 = sshll.u32 [#allocation11], 4
      %s391 = int_to_ptr.vmem [resolvable:$true] %s390
      %393 = dma.vmem_to_hbm [thread:$0]  %s391, 64, %s5, [#allocation5]
    $region41: #{tpu_custom_call.1} parent=1 // pred_fallthru
      _
    // Predicated region
    $region42: #{tpu_custom_call.1} parent=1 // pred_check
      _
    $region43: #{tpu_custom_call.1} parent=1 // pred_check_branch
      %395 = sbr.rel (0) target = $region45
    $region44: #{tpu_custom_call.1} parent=1 // pred_region
      %396 = dma.done [#allocation5], 64
    $region45: #{tpu_custom_call.1} parent=1 // pred_fallthru
      _
    %397 = vsyncpa [#allocation4], 1
    %398 = vsyncpa [#allocation7], 1
    %399 = vsyncpa [#allocation10], 1
    %400 = vsyncpa [#allocation5], 1

</llo_original>
